<compile_context>
chip_gen: v7x
topology: tpu7x:2x2x1
jax: 0.10.0
libtpu: 0.0.40
codegen_flags: <defaults>
</compile_context>

<pallas_src>
import numpy as np
import jax
import jax.numpy as jnp
from jax.experimental import pallas as pl
from jax.experimental.pallas import tpu as pltpu


def _make_ca_layer2_kernel(nc: int, true_hw: int):
    inv_hw = np.float32(1.0 / true_hw)

    def kernel(x_ref, w_ref, o_ref):
        # x_ref: (N*C, HW)   native dtype, lane-dense
        # w_ref: (2*N*C, N*C) f32, packed [kron(I_N, w1).T ; kron(I_N, w2)]
        # o_ref: (N*C, HW)
        x = x_ref[...]                                               # keep native dtype

        # Squeeze: global average pool over the flattened spatial (lane) axis.
        pooled = jnp.sum(x, axis=-1, keepdims=True).astype(jnp.float32) * inv_hw  # (NC, 1)

        w1t = w_ref[:nc, :].astype(jnp.float32)                      # kron(I_N, w1).T  (NC, NC)
        w2b = w_ref[nc:, :].astype(jnp.float32)                      # kron(I_N, w2)    (NC, NC)

        # Excite, kept off the MXU: VPU broadcast-mul + XLU reductions.
        # conv1 + ReLU:  z_row[0, n*C+co] = sum_ci w1[co, ci] * pooled[n*C+ci]
        z_row = jnp.maximum(jnp.sum(w1t * pooled, axis=0, keepdims=True), 0.0)     # (1, NC)
        # conv2:         s_col[n*C+co, 0] = sum_ci w2[co, ci] * z[n*C+ci]
        s_col = jnp.sum(w2b * z_row, axis=1, keepdims=True)                         # (NC, 1)
        # Sigmoid on the EUP (exp + approximate reciprocal).
        s = pl.reciprocal(1.0 + jnp.exp(-s_col), approx=True)

        # Channel-wise rescale: lane-broadcast of the per-(batch, channel) gate.
        o_ref[...] = x * s.astype(x.dtype)

    return kernel


def ca_layer2(x, w1, w2):
    """x: (N, C, H, W); w1, w2: (C, C) 1x1 conv weights (bias=False). Returns (N, C, H, W)."""
    n, c, h, w = x.shape
    hw = h * w
    nc = n * c
    assert w1.shape == (c, c) and w2.shape == (c, c)

    # Fold batch into the sublane axis -> one lane-dense (N*C, HW) slab.
    xr = x.reshape(nc, hw)

    # Block-diagonal per-batch weights, packed into a single array (one DMA, one VMEM tile).
    eye = jnp.eye(n, dtype=jnp.float32)
    w_packed = jnp.concatenate(
        [jnp.kron(eye, w1.T.astype(jnp.float32)),    # (NC, NC)
         jnp.kron(eye, w2.astype(jnp.float32))],     # (NC, NC)
        axis=0)                                      # (2*NC, NC)

    grid_spec = pltpu.PrefetchScalarGridSpec(
        num_scalar_prefetch=0,
        grid=(1,),                                   # single fused step: whole slab fits VMEM
        in_specs=[
            pl.BlockSpec((nc, hw), lambda i: (0, 0)),        # activation slab
            pl.BlockSpec((2 * nc, nc), lambda i: (0, 0)),    # packed weights
        ],
        out_specs=pl.BlockSpec((nc, hw), lambda i: (0, 0)),
    )
    out = pl.pallas_call(
        _make_ca_layer2_kernel(nc, hw),
        out_shape=jax.ShapeDtypeStruct((nc, hw), x.dtype),
        grid_spec=grid_spec,
        compiler_params=pltpu.CompilerParams(
            dimension_semantics=("arbitrary",)),     # single step; re-split batch for big N on v7x
    )(xr, w_packed)
    return out.reshape(n, c, h, w)


if __name__ == "__main__":
    channel = 4                       # CALayer2(channel=4); reduction is forced to 1 in __init__
    n, h, w = 2, 16, 16

    key = jax.random.PRNGKey(0)
    k1, k2, k3 = jax.random.split(key, 3)
    x = jax.random.normal(k1, (n, channel, h, w), jnp.float32)
    # Deterministic 1x1 conv weights (bias=False), kaiming-uniform-like range.
    bound = 1.0 / np.sqrt(channel)
    w1 = jax.random.uniform(k2, (channel, channel), jnp.float32, -bound, bound)
    w2 = jax.random.uniform(k3, (channel, channel), jnp.float32, -bound, bound)

    out = jax.block_until_ready(ca_layer2(x, w1, w2))

    # Plain-JAX reference of CALayer2.forward.
    pooled = jnp.mean(x, axis=(2, 3))                           # (N, C)
    zr = jnp.maximum(pooled @ w1.T, 0.0)                        # conv1 + ReLU
    sr = jax.nn.sigmoid(zr @ w2.T)                              # conv2 + Sigmoid
    ref = x * sr[:, :, None, None]

    assert out.shape == x.shape
    # Tolerance covers the approximate-reciprocal (EUP) sigmoid vs. the exact reference.
    assert jnp.allclose(out, ref, atol=2e-3, rtol=2e-3)
    print("KERNEL_OK")
</pallas_src>

<mosaic_0001>
module attributes {stable_mosaic.version = 11 : i64} {
  func.func @kernel(%arg0: i32, %arg1: memref<8x256xf32, #tpu.memory_space<vmem>>, %arg2: memref<16x8xf32, #tpu.memory_space<vmem>>, %arg3: memref<8x256xf32, #tpu.memory_space<vmem>>) attributes {dimension_semantics = [#tpu.dimension_semantics<arbitrary>], iteration_bounds = array<i64: 1>, scalar_prefetch = 0 : i64, scratch_operands = 0 : i64, tpu.core_type = #tpu.core_type<tc>, window_params = [{pipeline_mode = #tpu.pipeline_mode<synchronous>, transform_indices = @transform_0, window_bounds = array<i64: 8, 256>}, {pipeline_mode = #tpu.pipeline_mode<synchronous>, transform_indices = @transform_1, window_bounds = array<i64: 16, 8>}, {pipeline_mode = #tpu.pipeline_mode<synchronous>, transform_indices = @transform_2, window_bounds = array<i64: 8, 256>}]} {
    %c0 = arith.constant 0 : index
    %c0_0 = arith.constant 0 : index
    %0 = vector.load %arg1[%c0, %c0_0] : memref<8x256xf32, #tpu.memory_space<vmem>>, vector<8x256xf32>
    %cst = arith.constant dense<0.000000e+00> : vector<8xf32>
    %1 = vector.multi_reduction <add>, %0, %cst [1] : vector<8x256xf32> to vector<8xf32>
    %2 = vector.shape_cast %1 : vector<8xf32> to vector<8x1xf32>
    %cst_1 = arith.constant 3.906250e-03 : f32
    %3 = vector.broadcast %cst_1 : f32 to vector<8x1xf32>
    %4 = arith.mulf %2, %3 : vector<8x1xf32>
    %c0_2 = arith.constant 0 : index
    %c0_3 = arith.constant 0 : index
    %5 = vector.load %arg2[%c0_2, %c0_3] : memref<16x8xf32, #tpu.memory_space<vmem>>, vector<8x8xf32>
    %c8 = arith.constant 8 : index
    %c0_4 = arith.constant 0 : index
    %6 = vector.load %arg2[%c8, %c0_4] : memref<16x8xf32, #tpu.memory_space<vmem>>, vector<8x8xf32>
    %7 = vector.broadcast %4 : vector<8x1xf32> to vector<8x8xf32>
    %8 = arith.mulf %5, %7 : vector<8x8xf32>
    %cst_5 = arith.constant dense<0.000000e+00> : vector<8xf32>
    %9 = vector.multi_reduction <add>, %8, %cst_5 [0] : vector<8x8xf32> to vector<8xf32>
    %10 = vector.shape_cast %9 : vector<8xf32> to vector<1x8xf32>
    %cst_6 = arith.constant 0.000000e+00 : f32
    %11 = vector.broadcast %cst_6 : f32 to vector<1x8xf32>
    %12 = arith.maximumf %10, %11 : vector<1x8xf32>
    %13 = vector.broadcast %12 : vector<1x8xf32> to vector<8x8xf32>
    %14 = arith.mulf %6, %13 : vector<8x8xf32>
    %cst_7 = arith.constant dense<0.000000e+00> : vector<8xf32>
    %15 = vector.multi_reduction <add>, %14, %cst_7 [1] : vector<8x8xf32> to vector<8xf32>
    %16 = vector.shape_cast %15 : vector<8xf32> to vector<8x1xf32>
    %cst_8 = arith.constant 0.000000e+00 : f32
    %17 = vector.broadcast %cst_8 : f32 to vector<8x1xf32>
    %18 = arith.subf %17, %16 : vector<8x1xf32>
    %19 = math.exp %18 : vector<8x1xf32>
    %cst_9 = arith.constant 1.000000e+00 : f32
    %20 = vector.broadcast %cst_9 : f32 to vector<8x1xf32>
    %21 = arith.addf %20, %19 : vector<8x1xf32>
    %22 = tpu.reciprocal %21 {approx = true} : vector<8x1xf32> -> vector<8x1xf32>
    %23 = vector.broadcast %22 : vector<8x1xf32> to vector<8x256xf32>
    %24 = arith.mulf %0, %23 : vector<8x256xf32>
    %c0_10 = arith.constant 0 : index
    %c0_11 = arith.constant 0 : index
    %25 = vector.load %arg3[%c0_10, %c0_11] : memref<8x256xf32, #tpu.memory_space<vmem>>, vector<8x256xf32>
    tpu.vector_store %arg3[%c0_10, %c0_11], %24 {strides = array<i32>} : memref<8x256xf32, #tpu.memory_space<vmem>>, vector<8x256xf32>,
    return
  }
  func.func @transform_0(%arg0: i32) -> (i32, i32) {
    %c0_i32 = arith.constant 0 : i32
    %c0_i32_0 = arith.constant 0 : i32
    %c0_i32_1 = arith.constant 0 : i32
    return %c0_i32, %c0_i32_0 : i32, i32
  }
  func.func @transform_1(%arg0: i32) -> (i32, i32) {
    %c0_i32 = arith.constant 0 : i32
    %c0_i32_0 = arith.constant 0 : i32
    %c0_i32_1 = arith.constant 0 : i32
    return %c0_i32, %c0_i32_0 : i32, i32
  }
  func.func @transform_2(%arg0: i32) -> (i32, i32) {
    %c0_i32 = arith.constant 0 : i32
    %c0_i32_0 = arith.constant 0 : i32
    %c0_i32_1 = arith.constant 0 : i32
    return %c0_i32, %c0_i32_0 : i32, i32
  }
}

</mosaic_0001>

<llo_original>
// kernel: tpu_custom_call.1
$region0: #{tpu_custom_call.1}
  #allocation0 [shape = 'u32[]', space=smem, size = 0x4, offset = 0x4, fixed_abs, tag = 'smem constant byte address 0x4 - core index']
  #allocation1 [shape = 'u32[144,128]{1,0:T(1,128)}', space=vmem, size = 0x12000, scoped, tag = 'internal scratch']
  %s0 = inlined_call_operand.vmem [shape: f32[8,256], index: 0, kind: input, shape index: {}]
  %s1 = inlined_call_operand.vmem [shape: f32[16,8], index: 1, kind: input, shape index: {}]
  %s2 = inlined_call_operand.hbm [shape: f32[8,256], index: 2, kind: output, shape index: {}]
  %s3 = sld [smem:[#allocation0]]
  $region18: #{tpu_custom_call.1} parent=0
    _
  %s5 = ssub.s32 1, %s3
  %s6 = scalar_select 0, %s5, %s3
  $region1: #{tpu_custom_call.1} parent=0
    #allocation2 [shape = 'u8[8192]{0}', space=vmem, size = 0x2000, scoped, tag = 'output window, operand 0, single buffered']
    #allocation3 [shape = 's32[1]{0}', space=sflag, size = 0x4, scoped, tag = 'scoped memory for tpu_custom_call.1']
    %7 = vsyncpa [#allocation3], 0
    // Predicated region
    $region2: #{tpu_custom_call.1} parent=1 // pred_check
      _
    $region3: #{tpu_custom_call.1} parent=1 // pred_check_branch
      %9 = sbr.rel (0) target = $region5
    $region4: #{tpu_custom_call.1} parent=1 // pred_region
      _
    $region5: #{tpu_custom_call.1} parent=1 // pred_fallthru
      _
    // Predicated region
    $region6: #{tpu_custom_call.1} parent=1 // pred_check
      _
    $region7: #{tpu_custom_call.1} parent=1 // pred_check_branch
      %11 = sbr.rel (0) target = $region9
    $region8: #{tpu_custom_call.1} parent=1 // pred_region
      _
    $region9: #{tpu_custom_call.1} parent=1 // pred_fallthru
      _
    %v12 = vld [vmem:[%s0] sm:$0xff]
    %v13 = vld [vmem:[%s0 + $0x8] sm:$0xff]
    %v14 = vadd.f32 %v12, %v13
    %15 = vadd.xlane.f32.xlu0 %v14
    %v16 = vpop.xlane.xlu0 %15
    %v17 = vmul.f32 %v16, 0.00390625
    %v18 = vld [vmem:[%s1] sm:$0xff]
    %v19 = vld [vmem:[%s1 + $0x8] sm:$0xff]
    %v20 = vmul.f32 %v18, %v17
    %vm21 = vcmask 64512
    %v22 = vsel %vm21, %v20, 0.0
    %v23 = vrot.slane %v22, 4
    %v24 = vadd.f32 %v22, %v23
    %v25 = vrot.slane %v24, 2
    %v26 = vadd.f32 %v24, %v25
    %v27 = vrot.slane %v26, 1
    %v28 = vadd.f32 %v26, %v27
    %v29 = vmax.f32 %v28, 0.0
    %v30 = vmul.f32 %v19, %v29
    %v31 = vsel %vm21, %v30, 0.0
    %32 = vadd.xlane.f32.xlu0 %v31
    %v33 = vpop.xlane.xlu0 %32
    %v34 = vsub.f32 0.0, %v33
    %v35 = vmul.f32 %v34, 1.442695
    %v36 = vpow.pop %v35
    %v37 = vadd.f32 %v36, 1.0
    %v38 = vrcp.pop %v37
    %v39 = vmul.f32 %v12, %v38
    %v40 = vmul.f32 %v13, %v38
    %41 = vst [vmem:[#allocation2] sm:$0xff] %v39
    %42 = vst [vmem:[#allocation2 + $0x8] sm:$0xff] %v40
    // Predicated region
    $region10: #{tpu_custom_call.1} parent=1 // pred_check
      _
    $region11: #{tpu_custom_call.1} parent=1 // pred_check_branch
      %44 = sbr.rel (0) target = $region13
    $region12: #{tpu_custom_call.1} parent=1 // pred_region
      %s46 = ssub.s32 256, 256
      %47 = vsyncadd [#allocation3], %s46
      %s49 = sshll.u32 [#allocation2], 4
      %s50 = int_to_ptr.vmem [resolvable:$true] %s49
      %52 = dma.vmem_to_hbm [thread:$0]  %s50, 256, %s2, [#allocation3]
    $region13: #{tpu_custom_call.1} parent=1 // pred_fallthru
      _
    // Predicated region
    $region14: #{tpu_custom_call.1} parent=1 // pred_check
      _
    $region15: #{tpu_custom_call.1} parent=1 // pred_check_branch
      %54 = sbr.rel (0) target = $region17
    $region16: #{tpu_custom_call.1} parent=1 // pred_region
      %55 = dma.done [#allocation3], 256
    $region17: #{tpu_custom_call.1} parent=1 // pred_fallthru
      _
    %56 = vsyncpa [#allocation3], 1

</llo_original>
